<compile_context>
chip_gen: v5e
topology: v5e:2x2
jax: 0.10.0
libtpu: 0.0.40
codegen_flags: <defaults>
</compile_context>

<pallas_src>
import jax
import jax.numpy as jnp
from jax.experimental import pallas as pl
from jax.experimental.pallas import tpu as pltpu

_LANE = 128


def _round_up(n, m):
    return ((n + m - 1) // m) * m


def mlp_kernel(x_ref, w1_ref, b1_ref, w2_ref, b2_ref, o_ref):
    # x_ref : [1, BN]     batch on lanes (last block may be partial -> masked)
    # w1_ref: [H, 128]    lane-replicated column of W1
    # b1_ref: [H, 128]    lane-replicated b1
    # w2_ref: [H, 128]    lane-replicated row of W2
    # b2_ref: [1, 1]      SMEM scalar
    # o_ref : [1, BN]
    w1 = w1_ref[...]
    b1 = b1_ref[...]
    w2 = w2_ref[...]
    b2 = b2_ref[0, 0]
    bn = o_ref.shape[1]
    # Process 128 lanes (one vreg width) at a time so the [H, 128] temporaries
    # stay in registers (no VMEM staging of a [H, block_n] intermediate).
    for j in range(bn // _LANE):
        sl = slice(j * _LANE, (j + 1) * _LANE)
        xj = x_ref[:, sl]                                    # [1, 128]
        # Layer 1 + ReLU: pure VPU broadcast multiply-add (no MXU).
        h = jnp.maximum(w1 * xj + b1, 0.0)                   # [H, 128]
        # Layer 2: elementwise multiply + sublane (XLU) reduce over H.
        yj = jnp.sum(h * w2, axis=0, keepdims=True)          # [1, 128]
        o_ref[:, sl] = (yj + b2).astype(o_ref.dtype)


def simple_model_forward(x, W1, b1, W2, b2, *, block_n_max=1024):
    """x: [N, 1] f32. W1: [H, 1], b1: [H], W2: [1, H], b2: [1] (PyTorch layout).
    Returns [N, 1] f32."""
    n = x.shape[0]
    hidden = W1.shape[0]

    # Block size: lane-aligned, >=2 grid steps once n >= 256 (so both v7x
    # TensorCores are used), capped so intermediates fit comfortably in VMEM
    # on every chip generation.
    if n >= 2 * _LANE:
        block_n = min(block_n_max, _round_up(pl.cdiv(n, 2), _LANE))
    else:
        block_n = _LANE
    grid_n = pl.cdiv(n, block_n)

    # Lane-major relayout (bitcast-free reshapes; no padding, no copies).
    x_row = x.reshape(1, n).astype(jnp.float32)
    w1_l = jnp.broadcast_to(W1.reshape(hidden, 1).astype(jnp.float32),
                            (hidden, _LANE))
    b1_l = jnp.broadcast_to(b1.reshape(hidden, 1).astype(jnp.float32),
                            (hidden, _LANE))
    w2_l = jnp.broadcast_to(W2.reshape(hidden, 1).astype(jnp.float32),
                            (hidden, _LANE))
    b2_s = b2.reshape(1, 1).astype(jnp.float32)

    cost = pl.CostEstimate(
        flops=int(5 * hidden * n),
        transcendentals=0,
        bytes_accessed=int(8 * n + 4 * (3 * hidden * _LANE + 1)),
    )

    out = pl.pallas_call(
        mlp_kernel,
        out_shape=jax.ShapeDtypeStruct((1, n), jnp.float32),
        grid=(grid_n,),
        in_specs=[
            pl.BlockSpec((1, block_n), lambda i: (0, i)),        # x   [1, n]
            pl.BlockSpec((hidden, _LANE), lambda i: (0, 0)),     # W1  [H, 128]
            pl.BlockSpec((hidden, _LANE), lambda i: (0, 0)),     # b1  [H, 128]
            pl.BlockSpec((hidden, _LANE), lambda i: (0, 0)),     # W2  [H, 128]
            pl.BlockSpec(memory_space=pltpu.MemorySpace.SMEM),   # b2  [1, 1]
        ],
        out_specs=pl.BlockSpec((1, block_n), lambda i: (0, i)),
        compiler_params=pltpu.CompilerParams(
            dimension_semantics=("parallel",)),
        cost_estimate=cost,
    )(x_row, w1_l, b1_l, w2_l, b2_s)

    return out.reshape(n, 1)


def init_params(key, in_dim=1, hidden=32, out_dim=1):
    # PyTorch-style U(-1/sqrt(fan_in), 1/sqrt(fan_in)) init, PyTorch layouts.
    k1, k2, k3, k4 = jax.random.split(key, 4)
    bound1 = 1.0 / jnp.sqrt(in_dim)
    bound2 = 1.0 / jnp.sqrt(hidden)
    W1 = jax.random.uniform(k1, (hidden, in_dim), jnp.float32, -bound1, bound1)
    b1 = jax.random.uniform(k2, (hidden,), jnp.float32, -bound1, bound1)
    W2 = jax.random.uniform(k3, (out_dim, hidden), jnp.float32, -bound2, bound2)
    b2 = jax.random.uniform(k4, (out_dim,), jnp.float32, -bound2, bound2)
    return W1, b1, W2, b2


if __name__ == "__main__":
    key = jax.random.PRNGKey(0)
    W1, b1, W2, b2 = init_params(key)

    # Same input as the PyTorch example: linspace(-5, 5, 100) with a feature dim.
    x = jnp.linspace(-5.0, 5.0, 100, dtype=jnp.float32).reshape(-1, 1)

    out = simple_model_forward(x, W1, b1, W2, b2)
    jax.block_until_ready(out)

    # Pure-JAX reference (PyTorch semantics: relu(x @ W1^T + b1) @ W2^T + b2).
    ref = jnp.maximum(x @ W1.T + b1[None, :], 0.0) @ W2.T + b2[None, :]
    assert out.shape == (100, 1)
    assert jnp.allclose(out, ref, atol=1e-5, rtol=1e-5)

    print("KERNEL_OK")
</pallas_src>

<mosaic_0001>
module attributes {stable_mosaic.version = 11 : i64} {
  func.func @mlp_kernel(%arg0: i32, %arg1: memref<1x128xf32, #tpu.memory_space<vmem>>, %arg2: memref<32x128xf32, #tpu.memory_space<vmem>>, %arg3: memref<32x128xf32, #tpu.memory_space<vmem>>, %arg4: memref<32x128xf32, #tpu.memory_space<vmem>>, %arg5: memref<1x1xf32, #tpu.memory_space<smem>>, %arg6: memref<1x128xf32, #tpu.memory_space<vmem>>) attributes {dimension_semantics = [#tpu.dimension_semantics<parallel>], iteration_bounds = array<i64: 1>, scalar_prefetch = 0 : i64, scratch_operands = 0 : i64, tpu.core_type = #tpu.core_type<tc>, window_params = [{transform_indices = @transform_0, window_bounds = array<i64: 1, 128>}, {pipeline_mode = #tpu.pipeline_mode<synchronous>, transform_indices = @transform_1, window_bounds = array<i64: 32, 128>}, {pipeline_mode = #tpu.pipeline_mode<synchronous>, transform_indices = @transform_2, window_bounds = array<i64: 32, 128>}, {pipeline_mode = #tpu.pipeline_mode<synchronous>, transform_indices = @transform_3, window_bounds = array<i64: 32, 128>}, {transform_indices = @transform_4, window_bounds = array<i64: 1, 1>}, {transform_indices = @transform_5, window_bounds = array<i64: 1, 128>}]} {
    %c0 = arith.constant 0 : index
    %c0_0 = arith.constant 0 : index
    %0 = vector.load %arg2[%c0, %c0_0] : memref<32x128xf32, #tpu.memory_space<vmem>>, vector<32x128xf32>
    %c0_1 = arith.constant 0 : index
    %c0_2 = arith.constant 0 : index
    %1 = vector.load %arg3[%c0_1, %c0_2] : memref<32x128xf32, #tpu.memory_space<vmem>>, vector<32x128xf32>
    %c0_3 = arith.constant 0 : index
    %c0_4 = arith.constant 0 : index
    %2 = vector.load %arg4[%c0_3, %c0_4] : memref<32x128xf32, #tpu.memory_space<vmem>>, vector<32x128xf32>
    %c0_5 = arith.constant 0 : index
    %c0_6 = arith.constant 0 : index
    %3 = memref.load %arg5[%c0_5, %c0_6] : memref<1x1xf32, #tpu.memory_space<smem>>
    %c0_7 = arith.constant 0 : index
    %c0_8 = arith.constant 0 : index
    %4 = vector.load %arg1[%c0_7, %c0_8] : memref<1x128xf32, #tpu.memory_space<vmem>>, vector<1x128xf32>
    %5 = vector.broadcast %4 : vector<1x128xf32> to vector<32x128xf32>
    %6 = arith.mulf %0, %5 : vector<32x128xf32>
    %7 = arith.addf %6, %1 : vector<32x128xf32>
    %cst = arith.constant 0.000000e+00 : f32
    %8 = vector.broadcast %cst : f32 to vector<32x128xf32>
    %9 = arith.maximumf %7, %8 : vector<32x128xf32>
    %10 = arith.mulf %9, %2 : vector<32x128xf32>
    %cst_9 = arith.constant dense<0.000000e+00> : vector<128xf32>
    %11 = vector.multi_reduction <add>, %10, %cst_9 [0] : vector<32x128xf32> to vector<128xf32>
    %12 = vector.shape_cast %11 : vector<128xf32> to vector<1x128xf32>
    %13 = vector.broadcast %3 : f32 to vector<1x128xf32>
    %14 = arith.addf %12, %13 : vector<1x128xf32>
    %c0_10 = arith.constant 0 : index
    %c0_11 = arith.constant 0 : index
    %15 = vector.load %arg6[%c0_10, %c0_11] : memref<1x128xf32, #tpu.memory_space<vmem>>, vector<1x128xf32>
    tpu.vector_store %arg6[%c0_10, %c0_11], %14 {strides = array<i32>} : memref<1x128xf32, #tpu.memory_space<vmem>>, vector<1x128xf32>,
    return
  }
  func.func @transform_0(%arg0: i32) -> (i32, i32) {
    %c0_i32 = arith.constant 0 : i32
    %c0_i32_0 = arith.constant 0 : i32
    return %c0_i32, %arg0 : i32, i32
  }
  func.func @transform_1(%arg0: i32) -> (i32, i32) {
    %c0_i32 = arith.constant 0 : i32
    %c0_i32_0 = arith.constant 0 : i32
    %c0_i32_1 = arith.constant 0 : i32
    return %c0_i32, %c0_i32_0 : i32, i32
  }
  func.func @transform_2(%arg0: i32) -> (i32, i32) {
    %c0_i32 = arith.constant 0 : i32
    %c0_i32_0 = arith.constant 0 : i32
    %c0_i32_1 = arith.constant 0 : i32
    return %c0_i32, %c0_i32_0 : i32, i32
  }
  func.func @transform_3(%arg0: i32) -> (i32, i32) {
    %c0_i32 = arith.constant 0 : i32
    %c0_i32_0 = arith.constant 0 : i32
    %c0_i32_1 = arith.constant 0 : i32
    return %c0_i32, %c0_i32_0 : i32, i32
  }
  func.func @transform_4(%arg0: i32) -> (i32, i32) {
    %c0_i32 = arith.constant 0 : i32
    %c0_i32_0 = arith.constant 0 : i32
    %c0_i32_1 = arith.constant 0 : i32
    return %c0_i32, %c0_i32_0 : i32, i32
  }
  func.func @transform_5(%arg0: i32) -> (i32, i32) {
    %c0_i32 = arith.constant 0 : i32
    %c0_i32_0 = arith.constant 0 : i32
    return %c0_i32, %arg0 : i32, i32
  }
}

</mosaic_0001>

<llo_original>
// kernel: tpu_custom_call.1
$region0: #{tpu_custom_call.1}
  #allocation0 [shape = 'u32[]', space=smem, size = 0x4, offset = 0x4, fixed_abs, tag = 'smem constant byte address 0x4 - core index']
  #allocation1 [shape = 'u32[72,128]{1,0:T(1,128)}', space=vmem, size = 0x9000, scoped, tag = 'internal scratch']
  #allocation2 [shape = 'f32[1,1]{1,0:T(1,128)S(6)}', space=smem, size = 0x200, scoped, tag = 'scoped memory for tpu_custom_call.1']
  %s0 = inlined_call_operand.vmem [shape: f32[1,100], index: 0, kind: input, shape index: {}]
  %s1 = inlined_call_operand.hbm [shape: f32[32,128], index: 1, kind: input, shape index: {}]
  %s2 = inlined_call_operand.hbm [shape: f32[32,128], index: 2, kind: input, shape index: {}]
  %s3 = inlined_call_operand.hbm [shape: f32[32,128], index: 3, kind: input, shape index: {}]
  %s4 = inlined_call_operand.<no memory space> [shape: f32[1,1], index: 4, kind: input, shape index: {}]
  %s5 = inlined_call_operand.hbm [shape: f32[1,100], index: 5, kind: output, shape index: {}]
  %s6 = sld [smem:[#allocation0]]
  $region42: #{tpu_custom_call.1} parent=0
    _
  %s8 = ssub.s32 1, %s6
  %s9 = scalar_select 0, %s8, %s6
  %10 = sst [smem:[#allocation2]] %s4
  $region1: #{tpu_custom_call.1} parent=0
    #allocation3 [shape = 'u8[16384]{0}', space=vmem, size = 0x4000, scoped, tag = 'input window, operand 1, single buffered']
    #allocation4 [shape = 's32[1]{0}', space=sflag, size = 0x4, scoped, tag = 'scoped memory for tpu_custom_call.1']
    #allocation5 [shape = 's32[1]{0}', space=sflag, size = 0x4, scoped, tag = 'scoped memory for tpu_custom_call.1']
    #allocation6 [shape = 'u8[16384]{0}', space=vmem, size = 0x4000, scoped, tag = 'input window, operand 2, single buffered']
    #allocation7 [shape = 's32[1]{0}', space=sflag, size = 0x4, scoped, tag = 'scoped memory for tpu_custom_call.1']
    #allocation8 [shape = 'u8[16384]{0}', space=vmem, size = 0x4000, scoped, tag = 'input window, operand 3, single buffered']
    #allocation9 [shape = 'u8[512]{0}', space=vmem, size = 0x400, scoped, tag = 'output window, operand 0, single buffered']
    %11 = vsyncpa [#allocation4], 0
    %12 = vsyncpa [#allocation7], 0
    %13 = vsyncpa [#allocation5], 0
    // Predicated region
    $region2: #{tpu_custom_call.1} parent=1 // pred_check
      _
    $region3: #{tpu_custom_call.1} parent=1 // pred_check_branch
      %15 = sbr.rel (0) target = $region5
    $region4: #{tpu_custom_call.1} parent=1 // pred_region
      _
    $region5: #{tpu_custom_call.1} parent=1 // pred_fallthru
      _
    // Predicated region
    $region6: #{tpu_custom_call.1} parent=1 // pred_check
      _
    $region7: #{tpu_custom_call.1} parent=1 // pred_check_branch
      %17 = sbr.rel (0) target = $region9
    $region8: #{tpu_custom_call.1} parent=1 // pred_region
      %19 = vsyncadd [#allocation4], 0
      %s20 = sshll.u32 %s1, 4
      %s21 = int_to_ptr.hbm [resolvable:$true] %s20
      %s22 = sshll.u32 [#allocation3], 4
      %s23 = int_to_ptr.vmem [resolvable:$true] %s22
      %28 = dma.hbm_to_vmem [thread:$0]  %s21, 512, %s23, [#allocation4], 128, 128, 8
    $region9: #{tpu_custom_call.1} parent=1 // pred_fallthru
      _
    // Predicated region
    $region10: #{tpu_custom_call.1} parent=1 // pred_check
      _
    $region11: #{tpu_custom_call.1} parent=1 // pred_check_branch
      %30 = sbr.rel (0) target = $region13
    $region12: #{tpu_custom_call.1} parent=1 // pred_region
      %32 = vsyncadd [#allocation7], 0
      %s33 = sshll.u32 %s2, 4
      %s34 = int_to_ptr.hbm [resolvable:$true] %s33
      %s35 = sshll.u32 [#allocation6], 4
      %s36 = int_to_ptr.vmem [resolvable:$true] %s35
      %41 = dma.hbm_to_vmem [thread:$0]  %s34, 512, %s36, [#allocation7], 128, 128, 8
    $region13: #{tpu_custom_call.1} parent=1 // pred_fallthru
      _
    // Predicated region
    $region14: #{tpu_custom_call.1} parent=1 // pred_check
      _
    $region15: #{tpu_custom_call.1} parent=1 // pred_check_branch
      %43 = sbr.rel (0) target = $region17
    $region16: #{tpu_custom_call.1} parent=1 // pred_region
      %45 = vsyncadd [#allocation7], 0
      %s46 = sshll.u32 %s3, 4
      %s47 = int_to_ptr.hbm [resolvable:$true] %s46
      %s48 = sshll.u32 [#allocation8], 4
      %s49 = int_to_ptr.vmem [resolvable:$true] %s48
      %54 = dma.hbm_to_vmem [thread:$0]  %s47, 512, %s49, [#allocation7], 128, 128, 8
    $region17: #{tpu_custom_call.1} parent=1 // pred_fallthru
      _
    // Predicated region
    $region18: #{tpu_custom_call.1} parent=1 // pred_check
      _
    $region19: #{tpu_custom_call.1} parent=1 // pred_check_branch
      %56 = sbr.rel (0) target = $region21
    $region20: #{tpu_custom_call.1} parent=1 // pred_region
      _
    $region21: #{tpu_custom_call.1} parent=1 // pred_fallthru
      _
    // Predicated region
    $region22: #{tpu_custom_call.1} parent=1 // pred_check
      _
    $region23: #{tpu_custom_call.1} parent=1 // pred_check_branch
      %58 = sbr.rel (0) target = $region25
    $region24: #{tpu_custom_call.1} parent=1 // pred_region
      %60 = dma.done [#allocation4], 512
    $region25: #{tpu_custom_call.1} parent=1 // pred_fallthru
      _
    // Predicated region
    $region26: #{tpu_custom_call.1} parent=1 // pred_check
      _
    $region27: #{tpu_custom_call.1} parent=1 // pred_check_branch
      %62 = sbr.rel (0) target = $region29
    $region28: #{tpu_custom_call.1} parent=1 // pred_region
      %64 = dma.done [#allocation7], 512
    $region29: #{tpu_custom_call.1} parent=1 // pred_fallthru
      _
    // Predicated region
    $region30: #{tpu_custom_call.1} parent=1 // pred_check
      _
    $region31: #{tpu_custom_call.1} parent=1 // pred_check_branch
      %66 = sbr.rel (0) target = $region33
    $region32: #{tpu_custom_call.1} parent=1 // pred_region
      %68 = dma.done [#allocation7], 512
    $region33: #{tpu_custom_call.1} parent=1 // pred_fallthru
      _
    %v69 = vld [vmem:[#allocation3] sm:$0xff]
    %v70 = vld [vmem:[#allocation3 + $0x8] sm:$0xff]
    %v71 = vld [vmem:[#allocation3 + $0x10] sm:$0xff]
    %v72 = vld [vmem:[#allocation3 + $0x18] sm:$0xff]
    %v73 = vld [vmem:[#allocation6] sm:$0xff]
    %v74 = vld [vmem:[#allocation6 + $0x8] sm:$0xff]
    %v75 = vld [vmem:[#allocation6 + $0x10] sm:$0xff]
    %v76 = vld [vmem:[#allocation6 + $0x18] sm:$0xff]
    %v77 = vld [vmem:[#allocation8] sm:$0xff]
    %v78 = vld [vmem:[#allocation8 + $0x8] sm:$0xff]
    %v79 = vld [vmem:[#allocation8 + $0x10] sm:$0xff]
    %v80 = vld [vmem:[#allocation8 + $0x18] sm:$0xff]
    %s81 = sld [smem:[#allocation2]]
    %v82 = vld [vmem:[%s0] sm:$0x1]
    %v84 = vperm.slane %v82, 0
    %v86 = vmul.f32 %v69, %v84
    %v87 = vmul.f32 %v70, %v84
    %v88 = vmul.f32 %v71, %v84
    %v89 = vmul.f32 %v72, %v84
    %v90 = vadd.f32 %v86, %v73
    %v91 = vadd.f32 %v87, %v74
    %v92 = vadd.f32 %v88, %v75
    %v93 = vadd.f32 %v89, %v76
    %v94 = vmax.f32 %v90, 0.0
    %v95 = vmax.f32 %v91, 0.0
    %v96 = vmax.f32 %v92, 0.0
    %v97 = vmax.f32 %v93, 0.0
    %v98 = vmul.f32 %v94, %v77
    %v99 = vmul.f32 %v95, %v78
    %v100 = vmul.f32 %v96, %v79
    %v101 = vmul.f32 %v97, %v80
    %v102 = vadd.f32 %v98, %v99
    %v103 = vadd.f32 %v102, %v100
    %v104 = vadd.f32 %v103, %v101
    %v105 = vrot.slane %v104, 4
    %v106 = vadd.f32 %v104, %v105
    %v107 = vrot.slane %v106, 2
    %v108 = vadd.f32 %v106, %v107
    %v109 = vrot.slane %v108, 1
    %v110 = vadd.f32 %v108, %v109
    %v111 = vstv %s81
    %v112 = vadd.f32 %v110, %v111
    %113 = vst [vmem:[#allocation9] sm:$0x1] %v112
    // Predicated region
    $region34: #{tpu_custom_call.1} parent=1 // pred_check
      _
    $region35: #{tpu_custom_call.1} parent=1 // pred_check_branch
      %115 = sbr.rel (0) target = $region37
    $region36: #{tpu_custom_call.1} parent=1 // pred_region
      %117 = vsyncadd [#allocation5], 0
      %s119 = sshll.u32 [#allocation9], 4
      %s120 = int_to_ptr.vmem [resolvable:$true] %s119
      %s121 = sshll.u32 %s5, 4
      %s122 = int_to_ptr.hbm [resolvable:$true] %s121
      %124 = dma.vmem_to_hbm [thread:$0]  %s120, 16, %s122, [#allocation5]
    $region37: #{tpu_custom_call.1} parent=1 // pred_fallthru
      _
    // Predicated region
    $region38: #{tpu_custom_call.1} parent=1 // pred_check
      _
    $region39: #{tpu_custom_call.1} parent=1 // pred_check_branch
      %126 = sbr.rel (0) target = $region41
    $region40: #{tpu_custom_call.1} parent=1 // pred_region
      %128 = dma.done [#allocation5], 16
    $region41: #{tpu_custom_call.1} parent=1 // pred_fallthru
      _
    %129 = vsyncpa [#allocation4], 1
    %130 = vsyncpa [#allocation7], 1
    %131 = vsyncpa [#allocation5], 1

</llo_original>
